<compile_context>
chip_gen: v7x
topology: tpu7x:2x2x1
jax: 0.10.0
libtpu: 0.0.40
codegen_flags: <defaults>
</compile_context>

<pallas_src>
import functools

import jax
import jax.numpy as jnp
import numpy as np
from jax.experimental import pallas as pl
from jax.experimental.pallas import tpu as pltpu

LANES = 128


def bn_criterion_kernel(x_ref, t_ref, out_ref, num_acc, cnt_acc):
    """One grid step processes TB rows x 128 lanes of flattened elements.

    x_ref: (2, TB, 128)  log-probs, x_ref[c] = class-c column (lane dense)
    t_ref: (TB, 128)     raw target tokens (0 = ignore, 1/2 = class index + 1)
    """
    i = pl.program_id(0)

    @pl.when(i == 0)
    def _():
        num_acc[...] = jnp.zeros_like(num_acc)
        cnt_acc[...] = jnp.zeros_like(cnt_acc)

    t = t_ref[...]                      # (TB, 128) int32
    p0 = x_ref[0]                       # (TB, 128) class-0 log-probs
    p1 = x_ref[1]                       # (TB, 128) class-1 log-probs

    valid = t != 0                      # bn_mask (target - 1 != -1)
    # Gather over the 2 classes fused with the mask: one cmp + two selects.
    # (Assumes target in {0,1,2} as required by torch.gather in the original.)
    sel = jnp.where(t == 2, p1, p0).astype(jnp.float32)
    num_acc[...] += jnp.where(valid, sel, 0.0)
    cnt_acc[...] += valid.astype(jnp.float32)

    @pl.when(i == pl.num_programs(0) - 1)
    def _():
        # Single deferred cross-lane/cross-sublane reduction.
        num = jnp.sum(num_acc[...], keepdims=True)          # (1, 1)
        cnt = jnp.sum(cnt_acc[...], keepdims=True)          # (1, 1)
        out_ref[...] = jnp.where(cnt > 0.0,
                                 -num / jnp.maximum(cnt, 1.0),
                                 jnp.zeros_like(num))


def bn_criterion(inp, target, *, rows_per_step=1024):
    """Pallas implementation of BNCriterion.forward(input, target)."""
    inp2 = jnp.asarray(inp).reshape(-1, 2)
    t = jnp.asarray(target).reshape(-1).astype(jnp.int32)
    n = t.shape[0]
    assert inp2.shape[0] == n, "input must have 2 entries per target element"

    # Row tiling over flattened elements: each row = 128 elements on lanes.
    rows = max(1, pl.cdiv(n, LANES))
    tb = min(rows_per_step, rows)
    tb = pl.cdiv(tb, 8) * 8                       # sublane multiple of 8
    n_steps = pl.cdiv(rows, tb)
    r = n_steps * tb
    n_pad = r * LANES

    # Pad with target==0 (ignored) / zero log-probs -> contributes nothing.
    x_pad = jnp.zeros((n_pad, 2), inp2.dtype).at[:n].set(inp2)
    t_pad = jnp.zeros((n_pad,), jnp.int32).at[:n].set(t)

    # One relayout pass in the wrapper: de-interleave the (N, 2) class pairs
    # so both classes and the target are lane-dense (., 128) slabs.
    x_cls = x_pad.T.reshape(2, r, LANES)          # (2, R, 128)
    t2 = t_pad.reshape(r, LANES)                  # (R, 128)

    itemsize = jnp.dtype(inp2.dtype).itemsize
    cost = pl.CostEstimate(flops=6 * n_pad,
                           transcendentals=0,
                           bytes_accessed=2 * n_pad * itemsize + 4 * n_pad + 4)

    out = pl.pallas_call(
        bn_criterion_kernel,
        out_shape=jax.ShapeDtypeStruct((1, 1), jnp.float32),
        grid_spec=pltpu.PrefetchScalarGridSpec(
            num_scalar_prefetch=0,
            grid=(n_steps,),
            in_specs=[
                pl.BlockSpec((2, tb, LANES), lambda i: (0, i, 0)),  # log-probs
                pl.BlockSpec((tb, LANES), lambda i: (i, 0)),        # targets
            ],
            out_specs=pl.BlockSpec((1, 1), lambda i: (0, 0)),
            scratch_shapes=[pltpu.VMEM((tb, LANES), jnp.float32),   # num acc
                            pltpu.VMEM((tb, LANES), jnp.float32)],  # cnt acc
        ),
        compiler_params=pltpu.CompilerParams(
            dimension_semantics=("arbitrary",)),
        cost_estimate=cost,
    )(x_cls, t2)
    return out[0, 0]


def bn_criterion_ref(inp, target):
    """Pure-JAX reference mirroring the PyTorch BNCriterion module."""
    t = target.reshape(-1) - 1
    mask = t != -1
    new_t = jnp.where(t < 0, 0, t)
    sel = jnp.take_along_axis(inp.reshape(-1, 2), new_t[:, None], axis=1)[:, 0]
    cnt = jnp.sum(mask)
    return jnp.where(cnt > 0,
                     -jnp.sum(jnp.where(mask, sel, 0.0)) / cnt.astype(jnp.float32),
                     jnp.float32(0.0))


if __name__ == "__main__":
    key = jax.random.PRNGKey(0)
    k1, k2 = jax.random.split(key)

    B, T = 2, 8                 # small shapes; target flattens to N = 16
    N = B * T
    # Binary log-probs (N, 2); target values in {0, 1, 2}:
    #   0 = ignore, 1 -> class 0, 2 -> class 1
    inp = jax.nn.log_softmax(
        jax.random.normal(k1, (N, 2), dtype=jnp.float32), axis=-1)
    target = jax.random.randint(k2, (B, T), 0, 3, dtype=jnp.int32)

    loss = jax.block_until_ready(bn_criterion(inp, target))
    ref = jax.block_until_ready(bn_criterion_ref(inp, target))
    np.testing.assert_allclose(np.asarray(loss), np.asarray(ref),
                               rtol=1e-6, atol=1e-6)
    print("KERNEL_OK")
</pallas_src>

<mosaic_0001>
module attributes {stable_mosaic.version = 11 : i64} {
  func.func @bn_criterion_kernel(%arg0: i32, %arg1: memref<2x8x128xf32, #tpu.memory_space<vmem>>, %arg2: memref<8x128xi32, #tpu.memory_space<vmem>>, %arg3: memref<1x1xf32, #tpu.memory_space<vmem>>, %arg4: memref<8x128xf32, #tpu.memory_space<vmem>>, %arg5: memref<8x128xf32, #tpu.memory_space<vmem>>) attributes {dimension_semantics = [#tpu.dimension_semantics<arbitrary>], iteration_bounds = array<i64: 1>, scalar_prefetch = 0 : i64, scratch_operands = 2 : i64, tpu.core_type = #tpu.core_type<tc>, window_params = [{transform_indices = @transform_0, window_bounds = array<i64: 2, 8, 128>}, {transform_indices = @transform_1, window_bounds = array<i64: 8, 128>}, {pipeline_mode = #tpu.pipeline_mode<synchronous>, transform_indices = @transform_2, window_bounds = array<i64: 1, 1>}]} {
    %c0_i32 = arith.constant 0 : i32
    %0 = arith.cmpi eq, %arg0, %c0_i32 : i32
    %1 = arith.extui %0 : i1 to i32
    %c0_i32_0 = arith.constant 0 : i32
    %2 = arith.cmpi ne, %1, %c0_i32_0 : i32
    scf.if %2 {
      %cst_18 = arith.constant 0.000000e+00 : f32
      %26 = vector.broadcast %cst_18 : f32 to vector<8x128xf32>
      %c0_19 = arith.constant 0 : index
      %c0_20 = arith.constant 0 : index
      %27 = vector.load %arg4[%c0_19, %c0_20] : memref<8x128xf32, #tpu.memory_space<vmem>>, vector<8x128xf32>
      tpu.vector_store %arg4[%c0_19, %c0_20], %26 {strides = array<i32>} : memref<8x128xf32, #tpu.memory_space<vmem>>, vector<8x128xf32>,
      %cst_21 = arith.constant 0.000000e+00 : f32
      %28 = vector.broadcast %cst_21 : f32 to vector<8x128xf32>
      %c0_22 = arith.constant 0 : index
      %c0_23 = arith.constant 0 : index
      %29 = vector.load %arg5[%c0_22, %c0_23] : memref<8x128xf32, #tpu.memory_space<vmem>>, vector<8x128xf32>
      tpu.vector_store %arg5[%c0_22, %c0_23], %28 {strides = array<i32>} : memref<8x128xf32, #tpu.memory_space<vmem>>, vector<8x128xf32>,
    } else {
    }
    %c0 = arith.constant 0 : index
    %c0_1 = arith.constant 0 : index
    %3 = vector.load %arg2[%c0, %c0_1] : memref<8x128xi32, #tpu.memory_space<vmem>>, vector<8x128xi32>
    %c0_2 = arith.constant 0 : index
    %c0_3 = arith.constant 0 : index
    %c0_4 = arith.constant 0 : index
    %4 = vector.load %arg1[%c0_2, %c0_3, %c0_4] : memref<2x8x128xf32, #tpu.memory_space<vmem>>, vector<1x8x128xf32>
    %5 = vector.shape_cast %4 : vector<1x8x128xf32> to vector<8x128xf32>
    %c1 = arith.constant 1 : index
    %c0_5 = arith.constant 0 : index
    %c0_6 = arith.constant 0 : index
    %6 = vector.load %arg1[%c1, %c0_5, %c0_6] : memref<2x8x128xf32, #tpu.memory_space<vmem>>, vector<1x8x128xf32>
    %7 = vector.shape_cast %6 : vector<1x8x128xf32> to vector<8x128xf32>
    %c0_i32_7 = arith.constant 0 : i32
    %8 = vector.broadcast %c0_i32_7 : i32 to vector<8x128xi32>
    %9 = arith.cmpi ne, %3, %8 : vector<8x128xi32>
    %c2_i32 = arith.constant 2 : i32
    %10 = vector.broadcast %c2_i32 : i32 to vector<8x128xi32>
    %11 = arith.cmpi eq, %3, %10 : vector<8x128xi32>
    %12 = arith.select %11, %7, %5 : vector<8x128xi1>, vector<8x128xf32>
    %c0_8 = arith.constant 0 : index
    %c0_9 = arith.constant 0 : index
    %13 = vector.load %arg4[%c0_8, %c0_9] : memref<8x128xf32, #tpu.memory_space<vmem>>, vector<8x128xf32>
    %cst = arith.constant 0.000000e+00 : f32
    %14 = vector.broadcast %cst : f32 to vector<8x128xf32>
    %15 = arith.select %9, %12, %14 : vector<8x128xi1>, vector<8x128xf32>
    %16 = arith.addf %13, %15 : vector<8x128xf32>
    %c0_10 = arith.constant 0 : index
    %c0_11 = arith.constant 0 : index
    %17 = vector.load %arg4[%c0_10, %c0_11] : memref<8x128xf32, #tpu.memory_space<vmem>>, vector<8x128xf32>
    tpu.vector_store %arg4[%c0_10, %c0_11], %16 {strides = array<i32>} : memref<8x128xf32, #tpu.memory_space<vmem>>, vector<8x128xf32>,
    %c0_12 = arith.constant 0 : index
    %c0_13 = arith.constant 0 : index
    %18 = vector.load %arg5[%c0_12, %c0_13] : memref<8x128xf32, #tpu.memory_space<vmem>>, vector<8x128xf32>
    %19 = arith.extui %9 : vector<8x128xi1> to vector<8x128xi32>
    %20 = arith.sitofp %19 : vector<8x128xi32> to vector<8x128xf32>
    %21 = arith.addf %18, %20 : vector<8x128xf32>
    %c0_14 = arith.constant 0 : index
    %c0_15 = arith.constant 0 : index
    %22 = vector.load %arg5[%c0_14, %c0_15] : memref<8x128xf32, #tpu.memory_space<vmem>>, vector<8x128xf32>
    tpu.vector_store %arg5[%c0_14, %c0_15], %21 {strides = array<i32>} : memref<8x128xf32, #tpu.memory_space<vmem>>, vector<8x128xf32>,
    %c0_i32_16 = arith.constant 0 : i32
    %23 = arith.cmpi eq, %arg0, %c0_i32_16 : i32
    %24 = arith.extui %23 : i1 to i32
    %c0_i32_17 = arith.constant 0 : i32
    %25 = arith.cmpi ne, %24, %c0_i32_17 : i32
    scf.if %25 {
      %c0_18 = arith.constant 0 : index
      %c0_19 = arith.constant 0 : index
      %26 = vector.load %arg4[%c0_18, %c0_19] : memref<8x128xf32, #tpu.memory_space<vmem>>, vector<8x128xf32>
      %27 = vector.shape_cast %26 : vector<8x128xf32> to vector<1x8x128xf32>
      %cst_20 = arith.constant dense<0.000000e+00> : vector<1xf32>
      %28 = vector.multi_reduction <add>, %27, %cst_20 [1, 2] : vector<1x8x128xf32> to vector<1xf32>
      %29 = vector.shape_cast %28 : vector<1xf32> to vector<1x1x1xf32>
      %30 = vector.extract %29[0, 0, 0] : f32 from vector<1x1x1xf32>
      %31 = vector.broadcast %30 : f32 to vector<1x1xf32>
      %c0_21 = arith.constant 0 : index
      %c0_22 = arith.constant 0 : index
      %32 = vector.load %arg5[%c0_21, %c0_22] : memref<8x128xf32, #tpu.memory_space<vmem>>, vector<8x128xf32>
      %33 = vector.shape_cast %32 : vector<8x128xf32> to vector<1x8x128xf32>
      %cst_23 = arith.constant dense<0.000000e+00> : vector<1xf32>
      %34 = vector.multi_reduction <add>, %33, %cst_23 [1, 2] : vector<1x8x128xf32> to vector<1xf32>
      %35 = vector.shape_cast %34 : vector<1xf32> to vector<1x1x1xf32>
      %36 = vector.extract %35[0, 0, 0] : f32 from vector<1x1x1xf32>
      %37 = vector.broadcast %36 : f32 to vector<1x1xf32>
      %cst_24 = arith.constant 0.000000e+00 : f32
      %38 = vector.broadcast %cst_24 : f32 to vector<1x1xf32>
      %39 = arith.cmpf ogt, %37, %38 : vector<1x1xf32>
      %cst_25 = arith.constant 0.000000e+00 : f32
      %40 = vector.broadcast %cst_25 : f32 to vector<1x1xf32>
      %41 = arith.subf %40, %31 : vector<1x1xf32>
      %cst_26 = arith.constant 1.000000e+00 : f32
      %42 = vector.broadcast %cst_26 : f32 to vector<1x1xf32>
      %43 = arith.maximumf %37, %42 : vector<1x1xf32>
      %44 = arith.divf %41, %43 : vector<1x1xf32>
      %cst_27 = arith.constant 0.000000e+00 : f32
      %45 = vector.broadcast %cst_27 : f32 to vector<1x1xf32>
      %46 = arith.select %39, %44, %45 : vector<1x1xi1>, vector<1x1xf32>
      %c0_28 = arith.constant 0 : index
      %c0_29 = arith.constant 0 : index
      %47 = vector.load %arg3[%c0_28, %c0_29] : memref<1x1xf32, #tpu.memory_space<vmem>>, vector<1x1xf32>
      tpu.vector_store %arg3[%c0_28, %c0_29], %46 {strides = array<i32>} : memref<1x1xf32, #tpu.memory_space<vmem>>, vector<1x1xf32>,
    } else {
    }
    return
  }
  func.func @transform_0(%arg0: i32) -> (i32, i32, i32) {
    %c0_i32 = arith.constant 0 : i32
    %c0_i32_0 = arith.constant 0 : i32
    %c0_i32_1 = arith.constant 0 : i32
    return %c0_i32, %arg0, %c0_i32_0 : i32, i32, i32
  }
  func.func @transform_1(%arg0: i32) -> (i32, i32) {
    %c0_i32 = arith.constant 0 : i32
    %c0_i32_0 = arith.constant 0 : i32
    return %arg0, %c0_i32 : i32, i32
  }
  func.func @transform_2(%arg0: i32) -> (i32, i32) {
    %c0_i32 = arith.constant 0 : i32
    %c0_i32_0 = arith.constant 0 : i32
    %c0_i32_1 = arith.constant 0 : i32
    return %c0_i32, %c0_i32_0 : i32, i32
  }
}

</mosaic_0001>

<llo_original>
// kernel: tpu_custom_call.1
$region0: #{tpu_custom_call.1}
  #allocation0 [shape = 'u32[]', space=smem, size = 0x4, offset = 0x4, fixed_abs, tag = 'smem constant byte address 0x4 - core index']
  #allocation1 [shape = 'u32[144,128]{1,0:T(1,128)}', space=vmem, size = 0x12000, scoped, tag = 'internal scratch']
  #allocation2 [shape = 'f32[8,128]{1,0:T(8,128)}', space=vmem, size = 0x1000, scoped, tag = 'scratch operand']
  #allocation3 [shape = 'f32[8,128]{1,0:T(8,128)}', space=vmem, size = 0x1000, scoped, tag = 'scratch operand']
  %s0 = inlined_call_operand.hbm [shape: f32[2,8,128], index: 0, kind: input, shape index: {}]
  %s1 = inlined_call_operand.hbm [shape: s32[8,128], index: 1, kind: input, shape index: {}]
  %s2 = inlined_call_operand.hbm [shape: f32[1,1], index: 2, kind: output, shape index: {}]
  %s3 = sld [smem:[#allocation0]]
  $region34: #{tpu_custom_call.1} parent=0
    _
  %s5 = ssub.s32 1, %s3
  %s6 = scalar_select 0, %s5, %s3
  $region1: #{tpu_custom_call.1} parent=0
    #allocation4 [shape = 'u8[8192]{0}', space=vmem, size = 0x2000, scoped, tag = 'input window, operand 0, single buffered']
    #allocation5 [shape = 's32[1]{0}', space=sflag, size = 0x4, scoped, tag = 'scoped memory for tpu_custom_call.1']
    #allocation6 [shape = 's32[1]{0}', space=sflag, size = 0x4, scoped, tag = 'scoped memory for tpu_custom_call.1']
    #allocation7 [shape = 'u8[4096]{0}', space=vmem, size = 0x1000, scoped, tag = 'input window, operand 1, single buffered']
    #allocation8 [shape = 's32[1]{0}', space=sflag, size = 0x4, scoped, tag = 'scoped memory for tpu_custom_call.1']
    #allocation9 [shape = 'u8[512]{0}', space=vmem, size = 0x400, scoped, tag = 'output window, operand 0, single buffered']
    %7 = vsyncpa [#allocation5], 0
    %8 = vsyncpa [#allocation8], 0
    %9 = vsyncpa [#allocation6], 0
    // Predicated region
    $region2: #{tpu_custom_call.1} parent=1 // pred_check
      _
    $region3: #{tpu_custom_call.1} parent=1 // pred_check_branch
      %11 = sbr.rel (0) target = $region5
    $region4: #{tpu_custom_call.1} parent=1 // pred_region
      %s13 = ssub.s32 256, 256
      %14 = vsyncadd [#allocation5], %s13
      %s15 = sshll.u32 [#allocation4], 4
      %s16 = int_to_ptr.vmem [resolvable:$true] %s15
      %21 = dma.hbm_to_vmem [thread:$0]  %s0, 256, %s16, [#allocation5], 128, 128, 8
    $region5: #{tpu_custom_call.1} parent=1 // pred_fallthru
      _
    // Predicated region
    $region6: #{tpu_custom_call.1} parent=1 // pred_check
      _
    $region7: #{tpu_custom_call.1} parent=1 // pred_check_branch
      %23 = sbr.rel (0) target = $region9
    $region8: #{tpu_custom_call.1} parent=1 // pred_region
      %s25 = ssub.s32 128, 128
      %26 = vsyncadd [#allocation8], %s25
      %s28 = sshll.u32 [#allocation7], 4
      %s29 = int_to_ptr.vmem [resolvable:$true] %s28
      %31 = dma.hbm_to_vmem [thread:$0]  %s1, 128, %s29, [#allocation8]
    $region9: #{tpu_custom_call.1} parent=1 // pred_fallthru
      _
    // Predicated region
    $region10: #{tpu_custom_call.1} parent=1 // pred_check
      _
    $region11: #{tpu_custom_call.1} parent=1 // pred_check_branch
      %33 = sbr.rel (0) target = $region13
    $region12: #{tpu_custom_call.1} parent=1 // pred_region
      %34 = dma.done [#allocation5], 256
    $region13: #{tpu_custom_call.1} parent=1 // pred_fallthru
      _
    // Predicated region
    $region14: #{tpu_custom_call.1} parent=1 // pred_check
      _
    $region15: #{tpu_custom_call.1} parent=1 // pred_check_branch
      %36 = sbr.rel (0) target = $region17
    $region16: #{tpu_custom_call.1} parent=1 // pred_region
      %37 = dma.done [#allocation8], 128
    $region17: #{tpu_custom_call.1} parent=1 // pred_fallthru
      _
    %p38 = scmp.eq.s32.totalorder 0, 0
    // Predicated region
    $region18: #{tpu_custom_call.1} parent=1 // pred_check
      %p39 = pneg %p38
    $region19: #{tpu_custom_call.1} parent=1 // pred_check_branch
      %41 = sbr.rel (%p39) target = $region21
    $region20: #{tpu_custom_call.1} parent=1 // pred_region
      %42 = vst [vmem:[#allocation2] sm:$0xff] 0.0
      %43 = vst [vmem:[#allocation3] sm:$0xff] 0.0
    $region21: #{tpu_custom_call.1} parent=1 // pred_fallthru
      _
    %v44 = vld [vmem:[#allocation7] sm:$0xff]
    %v45 = vld [vmem:[#allocation4] sm:$0xff]
    %s46 = scalar_lea.vmem [#allocation4], 8
    %v47 = vld [vmem:[%s46] sm:$0xff]
    %vm48 = vcmp.ne.s32.totalorder %v44, 0
    %vm49 = vcmp.eq.s32.totalorder %v44, 2
    %v50 = vsel %vm49, %v47, %v45
    %v51 = vld [vmem:[#allocation2] sm:$0xff]
    %v52 = vsel %vm48, %v50, 0.0
    %v53 = vadd.f32 %v51, %v52
    %54 = vst [vmem:[#allocation2] sm:$0xff] %v53
    %v55 = vld [vmem:[#allocation3] sm:$0xff]
    %v56 = vsel %vm48, 1, 0
    %v57 = vcvt.s32.f32 %v56
    %v58 = vadd.f32 %v55, %v57
    %59 = vst [vmem:[#allocation3] sm:$0xff] %v58
    // Predicated region
    $region22: #{tpu_custom_call.1} parent=1 // pred_check
      %p60 = pneg %p38
    $region23: #{tpu_custom_call.1} parent=1 // pred_check_branch
      %62 = sbr.rel (%p60) target = $region25
    $region24: #{tpu_custom_call.1} parent=1 // pred_region
      %v63 = vld [vmem:[#allocation2] sm:$0xff]
      %64 = vadd.xlane.f32.xlu0 %v63
      %v65 = vpop.xlane.xlu0 %64
      %v66 = vrot.slane %v65, 4
      %v67 = vadd.f32 %v65, %v66
      %v68 = vrot.slane %v67, 2
      %v69 = vadd.f32 %v67, %v68
      %v70 = vrot.slane %v69, 1
      %v71 = vadd.f32 %v69, %v70
      %s72 = vtos %v71
      %v73 = vstv %s72
      %v74 = vld [vmem:[#allocation3] sm:$0xff]
      %75 = vadd.xlane.f32.xlu0 %v74
      %v76 = vpop.xlane.xlu0 %75
      %v77 = vrot.slane %v76, 4
      %v78 = vadd.f32 %v76, %v77
      %v79 = vrot.slane %v78, 2
      %v80 = vadd.f32 %v78, %v79
      %v81 = vrot.slane %v80, 1
      %v82 = vadd.f32 %v80, %v81
      %s83 = vtos %v82
      %v84 = vstv %s83
      %vm85 = vcmp.gt.f32.partialorder %v84, 0.0
      %v86 = vsub.f32 0.0, %v73
      %v87 = vmax.f32 %v84, 1.0
      %v88 = vrcp.pop %v87
      %v89 = vmul.f32 %v86, %v88
      %v90 = vsel %vm85, %v89, 0.0
      %vm91 = vcmask 0
      %92 = vst.msk [vmem:[#allocation9] sm:$0x1] %vm91, %v90
    $region25: #{tpu_custom_call.1} parent=1 // pred_fallthru
      _
    // Predicated region
    $region26: #{tpu_custom_call.1} parent=1 // pred_check
      _
    $region27: #{tpu_custom_call.1} parent=1 // pred_check_branch
      %94 = sbr.rel (0) target = $region29
    $region28: #{tpu_custom_call.1} parent=1 // pred_region
      %s96 = ssub.s32 16, 16
      %97 = vsyncadd [#allocation6], %s96
      %s99 = sshll.u32 [#allocation9], 4
      %s100 = int_to_ptr.vmem [resolvable:$true] %s99
      %102 = dma.vmem_to_hbm [thread:$0]  %s100, 16, %s2, [#allocation6]
    $region29: #{tpu_custom_call.1} parent=1 // pred_fallthru
      _
    // Predicated region
    $region30: #{tpu_custom_call.1} parent=1 // pred_check
      _
    $region31: #{tpu_custom_call.1} parent=1 // pred_check_branch
      %104 = sbr.rel (0) target = $region33
    $region32: #{tpu_custom_call.1} parent=1 // pred_region
      %105 = dma.done [#allocation6], 16
    $region33: #{tpu_custom_call.1} parent=1 // pred_fallthru
      _
    %106 = vsyncpa [#allocation5], 1
    %107 = vsyncpa [#allocation8], 1
    %108 = vsyncpa [#allocation6], 1

</llo_original>
